<compile_context>
chip_gen: v7x
topology: tpu7x:2x2x1
jax: 0.10.0
libtpu: 0.0.40
codegen_flags: <defaults>
</compile_context>

<pallas_src>
import jax
import jax.numpy as jnp
from jax.experimental import pallas as pl
from jax.experimental.pallas import tpu as pltpu


# Packed-parameter slab layout (rows x 128 lanes, f32, zero-padded):
#   row 0     : w1[0, :16]
#   row 1     : w1[1, :16]
#   row 2     : b1[:16]
#   row 3     : b2[:32]
#   row 4     : b3[:3]          (lanes 3..127 are zero -- required)
#   rows 5-7  : unused (zero)
#   rows 8-23 : w2              (16, 32)
#   rows 24-55: w3 zero-padded  (32, 128); cols 3..127 are zero -- required
_PACK_ROWS = 56
_PACK_LANES = 128


def mlp_kernel(x_ref, p_ref, o_ref):
    x = x_ref[...]                           # (B, 2)
    p = p_ref[...]                           # (56, 128) -- single resident slab

    # ----- layer 1: Linear(2, 16) + ReLU on the VPU (K=2 -> 2 broadcast FMAs)
    x0 = x[:, 0:1]                           # (B, 1)
    x1 = x[:, 1:2]                           # (B, 1)
    w1r0 = p[0:1, 0:16]                      # (1, 16)
    w1r1 = p[1:2, 0:16]                      # (1, 16)
    b1 = p[2:3, 0:16]                        # (1, 16)
    h1 = jnp.maximum(x0 * w1r0 + x1 * w1r1 + b1, 0.0)        # (B, 16)

    # ----- layer 2: Linear(16, 32) + ReLU on the MXU
    w2 = p[8:24, 0:32]                       # (16, 32)
    b2 = p[3:4, 0:32]                        # (1, 32)
    h2 = jnp.dot(h1, w2, preferred_element_type=jnp.float32) + b2
    h2 = jnp.maximum(h2, 0.0)                # (B, 32)

    # ----- layer 3: Linear(32, 3) on the MXU via zero-padded (32, 128) weight.
    # Result is already lane-dense (B, 128); lanes >= 3 stay zero because both
    # the padded weight columns and the b3 row are zero there.
    w3_pad = p[24:56, :]                     # (32, 128)
    b3_row = p[4:5, :]                       # (1, 128)
    out = jnp.dot(h2, w3_pad, preferred_element_type=jnp.float32) + b3_row
    o_ref[...] = out.astype(o_ref.dtype)     # unmasked lane-dense store


def pack_params(w1, b1, w2, b2, w3, b3):
    """Pack all parameters into a single lane-dense f32[56, 128] slab.

    Weights are in (in_features, out_features) layout (transposed vs PyTorch).
    """
    p = jnp.zeros((_PACK_ROWS, _PACK_LANES), jnp.float32)
    p = p.at[0:2, 0:16].set(w1.astype(jnp.float32))       # (2, 16)
    p = p.at[2, 0:16].set(b1.astype(jnp.float32))         # (16,)
    p = p.at[3, 0:32].set(b2.astype(jnp.float32))         # (32,)
    p = p.at[4, 0:3].set(b3.astype(jnp.float32))          # (3,)
    p = p.at[8:24, 0:32].set(w2.astype(jnp.float32))      # (16, 32)
    p = p.at[24:56, 0:3].set(w3.astype(jnp.float32))      # (32, 3) zero-padded
    return p


def my_net_forward(x, packed_params):
    B = x.shape[0]
    vmem = pl.BlockSpec(memory_space=pltpu.MemorySpace.VMEM)
    out_pad = pl.pallas_call(
        mlp_kernel,
        out_shape=jax.ShapeDtypeStruct((B, _PACK_LANES), jnp.float32),
        in_specs=[vmem, vmem],
        out_specs=vmem,
    )(x, packed_params)
    # Downstream ops could consume the padded (B, 128) block directly; the
    # module spec requires (B, 3), so slice here.
    return out_pad[:, :3]


def init_params(key):
    """Deterministic init mimicking PyTorch nn.Linear default (U(+-1/sqrt(fan_in))).

    Weights stored transposed vs PyTorch, i.e. (in_features, out_features).
    """
    dims = [(2, 16), (16, 32), (32, 3)]
    params = []
    for fan_in, fan_out in dims:
        key, kw, kb = jax.random.split(key, 3)
        bound = 1.0 / jnp.sqrt(float(fan_in))
        w = jax.random.uniform(kw, (fan_in, fan_out), jnp.float32, -bound, bound)
        b = jax.random.uniform(kb, (fan_out,), jnp.float32, -bound, bound)
        params.extend([w, b])
    return tuple(params)


# TODO(synk): nn.MSELoss and the Adam optimizer are training-time members with
# no role in forward(); they are intentionally not translated.


if __name__ == "__main__":
    key = jax.random.PRNGKey(0)
    key, kx = jax.random.split(key)
    params = init_params(key)
    packed = pack_params(*params)

    B = 8
    x = jax.random.normal(kx, (B, 2), jnp.float32)

    out = my_net_forward(x, packed)
    out = jax.block_until_ready(out)

    # Pure-JAX reference (same math as the PyTorch forward).
    w1, b1, w2, b2, w3, b3 = params
    h1 = jnp.maximum(x @ w1 + b1[None, :], 0.0)
    h2 = jnp.maximum(h1 @ w2 + b2[None, :], 0.0)
    ref = h2 @ w3 + b3[None, :]

    assert out.shape == (B, 3)
    assert jnp.allclose(out, ref, atol=1e-5, rtol=1e-5)
    print("KERNEL_OK")
</pallas_src>

<mosaic_0001>
module attributes {stable_mosaic.version = 11 : i64} {
  func.func @mlp_kernel(%arg0: memref<8x2xf32, #tpu.memory_space<vmem>>, %arg1: memref<56x128xf32, #tpu.memory_space<vmem>>, %arg2: memref<8x128xf32, #tpu.memory_space<vmem>>) attributes {dimension_semantics = [], scalar_prefetch = 0 : i64, scratch_operands = 0 : i64, tpu.core_type = #tpu.core_type<tc>} {
    %c0 = arith.constant 0 : index
    %c0_0 = arith.constant 0 : index
    %0 = vector.load %arg0[%c0, %c0_0] : memref<8x2xf32, #tpu.memory_space<vmem>>, vector<8x2xf32>
    %c0_1 = arith.constant 0 : index
    %c0_2 = arith.constant 0 : index
    %1 = vector.load %arg1[%c0_1, %c0_2] : memref<56x128xf32, #tpu.memory_space<vmem>>, vector<56x128xf32>
    %2 = vector.extract_strided_slice %0 {offsets = [0, 0], sizes = [8, 1], strides = [1, 1]} : vector<8x2xf32> to vector<8x1xf32>
    %3 = vector.extract_strided_slice %0 {offsets = [0, 1], sizes = [8, 1], strides = [1, 1]} : vector<8x2xf32> to vector<8x1xf32>
    %4 = vector.extract_strided_slice %1 {offsets = [0, 0], sizes = [1, 16], strides = [1, 1]} : vector<56x128xf32> to vector<1x16xf32>
    %5 = vector.extract_strided_slice %1 {offsets = [1, 0], sizes = [1, 16], strides = [1, 1]} : vector<56x128xf32> to vector<1x16xf32>
    %6 = vector.extract_strided_slice %1 {offsets = [2, 0], sizes = [1, 16], strides = [1, 1]} : vector<56x128xf32> to vector<1x16xf32>
    %7 = vector.broadcast %2 : vector<8x1xf32> to vector<8x16xf32>
    %8 = vector.broadcast %4 : vector<1x16xf32> to vector<8x16xf32>
    %9 = arith.mulf %7, %8 : vector<8x16xf32>
    %10 = vector.broadcast %3 : vector<8x1xf32> to vector<8x16xf32>
    %11 = vector.broadcast %5 : vector<1x16xf32> to vector<8x16xf32>
    %12 = arith.mulf %10, %11 : vector<8x16xf32>
    %13 = arith.addf %9, %12 : vector<8x16xf32>
    %14 = vector.broadcast %6 : vector<1x16xf32> to vector<8x16xf32>
    %15 = arith.addf %13, %14 : vector<8x16xf32>
    %cst = arith.constant 0.000000e+00 : f32
    %16 = vector.broadcast %cst : f32 to vector<8x16xf32>
    %17 = arith.maximumf %15, %16 : vector<8x16xf32>
    %18 = vector.extract_strided_slice %1 {offsets = [8, 0], sizes = [16, 32], strides = [1, 1]} : vector<56x128xf32> to vector<16x32xf32>
    %19 = vector.extract_strided_slice %1 {offsets = [3, 0], sizes = [1, 32], strides = [1, 1]} : vector<56x128xf32> to vector<1x32xf32>
    %cst_3 = arith.constant dense<0.000000e+00> : vector<8x32xf32>
    %20 = tpu.matmul %17, %18, %cst_3 {dimension_numbers = #tpu.dot_dimension_numbers<[1], [0], [0], [1], [0, 0, 1, 1], [], []>} : vector<8x16xf32>, vector<16x32xf32>, vector<8x32xf32> -> vector<8x32xf32>
    %21 = vector.broadcast %19 : vector<1x32xf32> to vector<8x32xf32>
    %22 = arith.addf %20, %21 : vector<8x32xf32>
    %cst_4 = arith.constant 0.000000e+00 : f32
    %23 = vector.broadcast %cst_4 : f32 to vector<8x32xf32>
    %24 = arith.maximumf %22, %23 : vector<8x32xf32>
    %25 = vector.extract_strided_slice %1 {offsets = [24, 0], sizes = [32, 128], strides = [1, 1]} : vector<56x128xf32> to vector<32x128xf32>
    %26 = vector.extract_strided_slice %1 {offsets = [4, 0], sizes = [1, 128], strides = [1, 1]} : vector<56x128xf32> to vector<1x128xf32>
    %cst_5 = arith.constant dense<0.000000e+00> : vector<8x128xf32>
    %27 = tpu.matmul %24, %25, %cst_5 {dimension_numbers = #tpu.dot_dimension_numbers<[1], [0], [0], [1], [0, 0, 1, 1], [], []>} : vector<8x32xf32>, vector<32x128xf32>, vector<8x128xf32> -> vector<8x128xf32>
    %28 = vector.broadcast %26 : vector<1x128xf32> to vector<8x128xf32>
    %29 = arith.addf %27, %28 : vector<8x128xf32>
    %c0_6 = arith.constant 0 : index
    %c0_7 = arith.constant 0 : index
    %30 = vector.load %arg2[%c0_6, %c0_7] : memref<8x128xf32, #tpu.memory_space<vmem>>, vector<8x128xf32>
    tpu.vector_store %arg2[%c0_6, %c0_7], %29 {strides = array<i32>} : memref<8x128xf32, #tpu.memory_space<vmem>>, vector<8x128xf32>,
    return
  }
}

</mosaic_0001>

<llo_original>
// kernel: tpu_custom_call.1
$region0: #{tpu_custom_call.1}
  #allocation0 [shape = 'u32[]', space=smem, size = 0x4, offset = 0x4, fixed_abs, tag = 'smem constant byte address 0x4 - core index']
  #allocation1 [shape = 'u32[144,128]{1,0:T(1,128)}', space=vmem, size = 0x12000, scoped, tag = 'internal scratch']
  %s0 = inlined_call_operand.vmem [shape: f32[8,2], index: 0, kind: input, shape index: {}]
  %s1 = inlined_call_operand.hbm [shape: f32[56,128], index: 1, kind: input, shape index: {}]
  %s2 = inlined_call_operand.hbm [shape: f32[8,128], index: 2, kind: output, shape index: {}]
  %s3 = sld [smem:[#allocation0]]
  $region22: #{tpu_custom_call.1} parent=0
    _
  %s5 = ssub.s32 1, %s3
  %s6 = scalar_select 0, %s5, %s3
  $region1: #{tpu_custom_call.1} parent=0
    #allocation2 [shape = 'u8[28672]{0}', space=vmem, size = 0x7000, scoped, tag = 'input window, operand 1, single buffered']
    #allocation3 [shape = 's32[1]{0}', space=sflag, size = 0x4, scoped, tag = 'scoped memory for tpu_custom_call.1']
    #allocation4 [shape = 's32[1]{0}', space=sflag, size = 0x4, scoped, tag = 'scoped memory for tpu_custom_call.1']
    #allocation5 [shape = 'u8[4096]{0}', space=vmem, size = 0x1000, scoped, tag = 'output window, operand 0, single buffered']
    %7 = vsyncpa [#allocation3], 0
    %8 = vsyncpa [#allocation4], 0
    // Predicated region
    $region2: #{tpu_custom_call.1} parent=1 // pred_check
      _
    $region3: #{tpu_custom_call.1} parent=1 // pred_check_branch
      %10 = sbr.rel (0) target = $region5
    $region4: #{tpu_custom_call.1} parent=1 // pred_region
      _
    $region5: #{tpu_custom_call.1} parent=1 // pred_fallthru
      _
    // Predicated region
    $region6: #{tpu_custom_call.1} parent=1 // pred_check
      _
    $region7: #{tpu_custom_call.1} parent=1 // pred_check_branch
      %12 = sbr.rel (0) target = $region9
    $region8: #{tpu_custom_call.1} parent=1 // pred_region
      %s14 = ssub.s32 896, 896
      %15 = vsyncadd [#allocation3], %s14
      %s16 = sshll.u32 [#allocation2], 4
      %s17 = int_to_ptr.vmem [resolvable:$true] %s16
      %22 = dma.hbm_to_vmem [thread:$0]  %s1, 896, %s17, [#allocation3], 128, 128, 8
    $region9: #{tpu_custom_call.1} parent=1 // pred_fallthru
      _
    // Predicated region
    $region10: #{tpu_custom_call.1} parent=1 // pred_check
      _
    $region11: #{tpu_custom_call.1} parent=1 // pred_check_branch
      %24 = sbr.rel (0) target = $region13
    $region12: #{tpu_custom_call.1} parent=1 // pred_region
      %25 = dma.done [#allocation3], 896
    $region13: #{tpu_custom_call.1} parent=1 // pred_fallthru
      _
    %v26 = vld [vmem:[%s0] sm:$0xff]
    %v27 = vld [vmem:[#allocation2] sm:$0xff]
    %v28 = vld [vmem:[#allocation2 + $0x8] sm:$0xff]
    %v29 = vld [vmem:[#allocation2 + $0x10] sm:$0xff]
    %v30 = vld [vmem:[#allocation2 + $0x18] sm:$0xff]
    %v31 = vld [vmem:[#allocation2 + $0x20] sm:$0xff]
    %v32 = vld [vmem:[#allocation2 + $0x28] sm:$0xff]
    %v33 = vld [vmem:[#allocation2 + $0x30] sm:$0xff]
    %35 = vset.pattern.permute.xlu0 0
    %36 = vperm.xlu0 %35, %v26
    %v37 = vpop.permute.xlu0 %36
    %v39 = vlaneseq
    %v40 = vshrl.u32 %v39, 7
    %v41 = vsub.s32 0, %v40
    %v42 = vrot.slane %v27, %v41
    %v43 = vmul.f32 %v37, %v42
    %44 = vset.pattern.permute.xlu0 1
    %45 = vperm.xlu0 %44, %v26
    %v46 = vpop.permute.xlu0 %45
    %v48 = vlaneseq
    %v49 = vshrl.u32 %v48, 7
    %v50 = vsub.s32 1, %v49
    %v51 = vrot.slane %v27, %v50
    %v52 = vmul.f32 %v46, %v51
    %v53 = vadd.f32 %v43, %v52
    %v54 = vlaneseq
    %v55 = vshrl.u32 %v54, 7
    %v56 = vsub.s32 2, %v55
    %v57 = vrot.slane %v27, %v56
    %v58 = vadd.f32 %v53, %v57
    %v59 = vmax.f32 %v58, 0.0
    %v60 = vlaneseq
    %v61 = vshrl.u32 %v60, 7
    %v62 = vsub.s32 3, %v61
    %v63 = vrot.slane %v27, %v62
    %vm64 = vcmask 130048
    %v66 = vsel %vm64, %v59, 0
    %68 = vmatprep.subr.mxu0 0.0
    %69 = vmatpush1.msra.mxu0 %v28
    %70 = vmatprep.subr.mxu0 0.0
    %71 = vmatpush1.msra.mxu0 %v29
    %72 = vmatprep.subr.mxu0 0.0
    %73 = vmatpush1.msra.mxu0 0.0
    %74 = vmatprep.subr.mxu0 0.0
    %75 = vmatpush1.msra.mxu0 0.0
    %76 = vmatprep.subr.mxu0 0.0
    %77 = vmatpush1.msra.mxu0 0.0
    %78 = vmatprep.subr.mxu0 0.0
    %79 = vmatpush1.msra.mxu0 0.0
    %80 = vmatprep.subr.mxu0 0.0
    %81 = vmatpush1.msra.mxu0 0.0
    %82 = vmatprep.subr.mxu0 0.0
    %83 = vmatpush1.msra.mxu0 0.0
    %84 = vmatprep.subr.mxu0 0.0
    %85 = vmatpush1.msra.mxu0 0.0
    %86 = vmatprep.subr.mxu0 0.0
    %87 = vmatpush1.msra.mxu0 0.0
    %88 = vmatprep.subr.mxu0 0.0
    %89 = vmatpush1.msra.mxu0 0.0
    %90 = vmatprep.subr.mxu0 0.0
    %91 = vmatpush1.msra.mxu0 0.0
    %92 = vmatprep.subr.mxu0 0.0
    %93 = vmatpush1.msra.mxu0 0.0
    %94 = vmatprep.subr.mxu0 0.0
    %95 = vmatpush1.msra.mxu0 0.0
    %96 = vmatprep.subr.mxu0 0.0
    %97 = vmatpush1.msra.mxu0 0.0
    %98 = vmatprep.subr.mxu0 0.0
    %99 = vmatpush1.msra.mxu0 0.0
    %100 = vmatprep.subr.mxu0 0.0
    %101 = vmatpush1.msra.mxu0 0.0
    %102 = vmatprep.subr.mxu0 0.0
    %103 = vmatpush1.msra.mxu0 0.0
    %104 = vmatprep.subr.mxu0 0.0
    %105 = vmatpush1.msra.mxu0 0.0
    %106 = vmatprep.subr.mxu0 0.0
    %107 = vmatpush1.msra.mxu0 0.0
    %108 = vmatprep.subr.mxu0 0.0
    %109 = vmatpush1.msra.mxu0 0.0
    %110 = vmatprep.subr.mxu0 0.0
    %111 = vmatpush1.msra.mxu0 0.0
    %112 = vmatprep.subr.mxu0 0.0
    %113 = vmatpush1.msra.mxu0 0.0
    %114 = vmatprep.subr.mxu0 0.0
    %115 = vmatpush1.msra.mxu0 0.0
    %116 = vmatprep.subr.mxu0 0.0
    %117 = vmatpush1.msra.mxu0 0.0
    %118 = vmatprep.subr.mxu0 0.0
    %119 = vmatpush1.msra.mxu0 0.0
    %120 = vmatprep.subr.mxu0 0.0
    %121 = vmatpush1.msra.mxu0 0.0
    %122 = vmatprep.subr.mxu0 0.0
    %123 = vmatpush1.msra.mxu0 0.0
    %124 = vmatprep.subr.mxu0 0.0
    %125 = vmatpush1.msra.mxu0 0.0
    %126 = vmatprep.subr.mxu0 0.0
    %127 = vmatpush1.msra.mxu0 0.0
    %128 = vmatprep.subr.mxu0 0.0
    %129 = vmatpush1.msra.mxu0 0.0
    %130 = vmatprep.subr.mxu0 0.0
    %131 = vmatpush1.msra.mxu0 0.0
    %132 = vmatprep.mubr.f32.mxu0 0.0
    %133 = vmatmul.mubr.f32.gmra.mrb[0].mxu0 %v66
    %v134 = vpop.f32.mrb[0].mxu0
    %v135 = vadd.f32 %v63, %v134
    %v136 = vpop.f32.mrb[0].mxu0
    %137 = vdwg.mxu0
    %v138 = vmax.f32 %v135, 0.0
    %v139 = vlaneseq
    %v140 = vshrl.u32 %v139, 7
    %v141 = vsub.s32 4, %v140
    %v142 = vrot.slane %v27, %v141
    %vm143 = vcmask 261120
    %v145 = vsel %vm143, %v138, 0
    %147 = vmatprep.subr.mxu0 0.0
    %148 = vmatpush1.msra.mxu0 %v30
    %149 = vmatprep.subr.mxu0 0.0
    %150 = vmatpush1.msra.mxu0 %v31
    %151 = vmatprep.subr.mxu0 0.0
    %152 = vmatpush1.msra.mxu0 %v32
    %153 = vmatprep.subr.mxu0 0.0
    %154 = vmatpush1.msra.mxu0 %v33
    %155 = vmatprep.subr.mxu0 0.0
    %156 = vmatpush1.msra.mxu0 0.0
    %157 = vmatprep.subr.mxu0 0.0
    %158 = vmatpush1.msra.mxu0 0.0
    %159 = vmatprep.subr.mxu0 0.0
    %160 = vmatpush1.msra.mxu0 0.0
    %161 = vmatprep.subr.mxu0 0.0
    %162 = vmatpush1.msra.mxu0 0.0
    %163 = vmatprep.subr.mxu0 0.0
    %164 = vmatpush1.msra.mxu0 0.0
    %165 = vmatprep.subr.mxu0 0.0
    %166 = vmatpush1.msra.mxu0 0.0
    %167 = vmatprep.subr.mxu0 0.0
    %168 = vmatpush1.msra.mxu0 0.0
    %169 = vmatprep.subr.mxu0 0.0
    %170 = vmatpush1.msra.mxu0 0.0
    %171 = vmatprep.subr.mxu0 0.0
    %172 = vmatpush1.msra.mxu0 0.0
    %173 = vmatprep.subr.mxu0 0.0
    %174 = vmatpush1.msra.mxu0 0.0
    %175 = vmatprep.subr.mxu0 0.0
    %176 = vmatpush1.msra.mxu0 0.0
    %177 = vmatprep.subr.mxu0 0.0
    %178 = vmatpush1.msra.mxu0 0.0
    %179 = vmatprep.subr.mxu0 0.0
    %180 = vmatpush1.msra.mxu0 0.0
    %181 = vmatprep.subr.mxu0 0.0
    %182 = vmatpush1.msra.mxu0 0.0
    %183 = vmatprep.subr.mxu0 0.0
    %184 = vmatpush1.msra.mxu0 0.0
    %185 = vmatprep.subr.mxu0 0.0
    %186 = vmatpush1.msra.mxu0 0.0
    %187 = vmatprep.subr.mxu0 0.0
    %188 = vmatpush1.msra.mxu0 0.0
    %189 = vmatprep.subr.mxu0 0.0
    %190 = vmatpush1.msra.mxu0 0.0
    %191 = vmatprep.subr.mxu0 0.0
    %192 = vmatpush1.msra.mxu0 0.0
    %193 = vmatprep.subr.mxu0 0.0
    %194 = vmatpush1.msra.mxu0 0.0
    %195 = vmatprep.subr.mxu0 0.0
    %196 = vmatpush1.msra.mxu0 0.0
    %197 = vmatprep.subr.mxu0 0.0
    %198 = vmatpush1.msra.mxu0 0.0
    %199 = vmatprep.subr.mxu0 0.0
    %200 = vmatpush1.msra.mxu0 0.0
    %201 = vmatprep.subr.mxu0 0.0
    %202 = vmatpush1.msra.mxu0 0.0
    %203 = vmatprep.subr.mxu0 0.0
    %204 = vmatpush1.msra.mxu0 0.0
    %205 = vmatprep.subr.mxu0 0.0
    %206 = vmatpush1.msra.mxu0 0.0
    %207 = vmatprep.subr.mxu0 0.0
    %208 = vmatpush1.msra.mxu0 0.0
    %209 = vmatprep.subr.mxu0 0.0
    %210 = vmatpush1.msra.mxu0 0.0
    %211 = vmatprep.mubr.f32.mxu0 0.0
    %212 = vmatmul.mubr.f32.gmra.mrb[0].mxu0 %v145
    %v213 = vpop.f32.mrb[0].mxu0
    %v214 = vadd.f32 %v142, %v213
    %v215 = vpop.f32.mrb[0].mxu0
    %216 = vdwg.mxu0
    %217 = vst [vmem:[#allocation5] sm:$0xff] %v214
    // Predicated region
    $region14: #{tpu_custom_call.1} parent=1 // pred_check
      _
    $region15: #{tpu_custom_call.1} parent=1 // pred_check_branch
      %219 = sbr.rel (0) target = $region17
    $region16: #{tpu_custom_call.1} parent=1 // pred_region
      %s221 = ssub.s32 128, 128
      %222 = vsyncadd [#allocation4], %s221
      %s224 = sshll.u32 [#allocation5], 4
      %s225 = int_to_ptr.vmem [resolvable:$true] %s224
      %227 = dma.vmem_to_hbm [thread:$0]  %s225, 128, %s2, [#allocation4]
    $region17: #{tpu_custom_call.1} parent=1 // pred_fallthru
      _
    // Predicated region
    $region18: #{tpu_custom_call.1} parent=1 // pred_check
      _
    $region19: #{tpu_custom_call.1} parent=1 // pred_check_branch
      %229 = sbr.rel (0) target = $region21
    $region20: #{tpu_custom_call.1} parent=1 // pred_region
      %230 = dma.done [#allocation4], 128
    $region21: #{tpu_custom_call.1} parent=1 // pred_fallthru
      _
    %231 = vsyncpa [#allocation3], 1
    %232 = vsyncpa [#allocation4], 1

</llo_original>
